<compile_context>
chip_gen: v5e
topology: v5e:2x2
jax: 0.10.0
libtpu: 0.0.40
codegen_flags: <defaults>
</compile_context>

<pallas_src>
import functools

import jax
import jax.numpy as jnp
from jax.experimental import pallas as pl
from jax.experimental.pallas import tpu as pltpu

GAMMA = 2.0  # matches FocalLoss(gamma=2)


def _focal_loss_kernel(x_ref, t_ref, at_ref, out_ref, *, total_n, gamma,
                       tile_n):
    j = pl.program_id(0)

    @pl.when(j == 0)
    def _():
        out_ref[...] = jnp.zeros_like(out_ref)

    x = x_ref[...].astype(jnp.float32)            # (TN, C) logits
    t = t_ref[...]                                # (TN, 1) int32 class ids
    a = at_ref[...].astype(jnp.float32)           # (TN, 1) alpha[targets]
    tn, c = x.shape

    # Numerically-stable log-softmax pieces over the class axis (dim=1).
    m = jnp.max(x, axis=1, keepdims=True)                          # (TN, 1)
    log_sum_e = jnp.log(jnp.sum(jnp.exp(x - m), axis=1, keepdims=True))

    # One-hot class mask built in-register (scatter_ equivalent).
    col = jax.lax.broadcasted_iota(jnp.int32, (tn, c), 1)
    class_mask = (col == t).astype(jnp.float32)                    # (TN, C)

    # Target logit -> target log-prob -> target prob.
    x_t = jnp.sum(x * class_mask, axis=1, keepdims=True)           # (TN, 1)
    log_p = (x_t - m) - log_sum_e                                  # (TN, 1)
    probs = jnp.exp(log_p)                                         # (TN, 1)

    one_minus_p = 1.0 - probs
    if float(gamma) == 2.0:
        focal_w = one_minus_p * one_minus_p                 # single VPU mul
    elif float(gamma) == int(gamma) and gamma >= 0:
        focal_w = jax.lax.integer_pow(one_minus_p, int(gamma))
    else:
        focal_w = jnp.power(jnp.maximum(one_minus_p, 0.0), gamma)

    batch_loss = -a * focal_w * log_p                              # (TN, 1)

    # Select-mask rows that only exist because of the trailing partial block
    # (their logits/targets are unspecified and may be NaN/inf).
    row = jax.lax.broadcasted_iota(jnp.int32, (tn, 1), 0)
    global_row = j * tile_n + row
    batch_loss = jnp.where(global_row < total_n, batch_loss, 0.0)

    # Per-step reduce is free XLU slack in an HBM-bound kernel; accumulate the
    # scalar partial into the resident one-vreg output block.
    out_ref[...] += jnp.broadcast_to(jnp.sum(batch_loss), out_ref.shape)


def focal_loss(x, targets, alpha, *, gamma=GAMMA, size_average=True,
               tile_n=None, vmem_limit_bytes=32 * 1024 * 1024):
    """x: (N, C) f32/bf16 logits; targets: (N,) ints in [0, C); alpha: (C, 1) or (C,)."""
    n, c = x.shape

    # Row tile: ~1 MiB of f32 logits per block, multiple of 8 sublanes,
    # capped at 1024 rows and at the rounded-up batch size.
    if tile_n is None:
        tile_n = (1 * 1024 * 1024) // max(c * 4, 1)
        tile_n = min(max(tile_n, 8), 1024)
    n_rounded = -(-n // 8) * 8
    tile_n = max(8, min((tile_n // 8) * 8, n_rounded))
    grid_n = pl.cdiv(n, tile_n)

    t2d = targets.reshape(n, 1).astype(jnp.int32)

    # alpha[targets] gathered once here (tiny lookup) -> one fewer full-tile
    # cross-lane reduce per grid step inside the kernel.
    alpha_vec = jnp.asarray(alpha, dtype=jnp.float32).reshape(-1)
    alpha_t = alpha_vec[targets.reshape(-1)].reshape(n, 1)

    kernel = functools.partial(_focal_loss_kernel, total_n=n,
                               gamma=float(gamma), tile_n=tile_n)

    out = pl.pallas_call(
        kernel,
        out_shape=jax.ShapeDtypeStruct((8, 128), jnp.float32),
        grid_spec=pltpu.PrefetchScalarGridSpec(
            num_scalar_prefetch=0,
            grid=(grid_n,),
            in_specs=[
                pl.BlockSpec((tile_n, c), lambda j: (j, 0)),   # logits
                pl.BlockSpec((tile_n, 1), lambda j: (j, 0)),   # targets
                pl.BlockSpec((tile_n, 1), lambda j: (j, 0)),   # alpha[targets]
            ],
            out_specs=pl.BlockSpec((8, 128), lambda j: (0, 0)),
        ),
        compiler_params=pltpu.CompilerParams(
            dimension_semantics=("arbitrary",),
            vmem_limit_bytes=vmem_limit_bytes),
    )(x, t2d, alpha_t)

    total = out[0, 0]
    if size_average:
        return total / jnp.float32(n)
    return total


def _reference_focal_loss(x, targets, alpha, gamma=GAMMA, size_average=True):
    p = jax.nn.softmax(x, axis=1)
    mask = jax.nn.one_hot(targets, x.shape[1], dtype=x.dtype)
    probs = jnp.sum(p * mask, axis=1, keepdims=True)
    a = jnp.asarray(alpha).reshape(-1)[targets].reshape(-1, 1)
    batch_loss = -a * (1.0 - probs) ** gamma * jnp.log(probs)
    return jnp.mean(batch_loss) if size_average else jnp.sum(batch_loss)


if __name__ == "__main__":
    key = jax.random.PRNGKey(0)
    kx, kt, ka, kx2, kt2 = jax.random.split(key, 5)

    # Test 1: FocalLoss(class_num=8) defaults (alpha=None -> ones, gamma=2,
    # size_average=True) on a small (16, 8) batch.
    N, C = 16, 8
    x = jax.random.normal(kx, (N, C), dtype=jnp.float32)
    targets = jax.random.randint(kt, (N,), 0, C, dtype=jnp.int32)
    alpha = jnp.ones((C, 1), dtype=jnp.float32)

    loss = focal_loss(x, targets, alpha)
    jax.block_until_ready(loss)
    ref = _reference_focal_loss(x, targets, alpha)
    assert jnp.allclose(loss, ref, atol=1e-5, rtol=1e-5), (loss, ref)

    # Test 2: batch not a multiple of the sublane tile, non-uniform alpha,
    # size_average=False (exercises trailing-block masking + sum path).
    N2, C2 = 13, 5
    x2 = jax.random.normal(kx2, (N2, C2), dtype=jnp.float32)
    targets2 = jax.random.randint(kt2, (N2,), 0, C2, dtype=jnp.int32)
    alpha2 = jax.random.uniform(ka, (C2, 1), dtype=jnp.float32) + 0.5

    loss2 = focal_loss(x2, targets2, alpha2, size_average=False)
    jax.block_until_ready(loss2)
    ref2 = _reference_focal_loss(x2, targets2, alpha2, size_average=False)
    assert jnp.allclose(loss2, ref2, atol=1e-5, rtol=1e-5), (loss2, ref2)

    print("KERNEL_OK")
</pallas_src>

<mosaic_0001>
module attributes {stable_mosaic.version = 11 : i64} {
  func.func @_focal_loss_kernel(%arg0: i32, %arg1: memref<16x8xf32, #tpu.memory_space<vmem>>, %arg2: memref<16x1xi32, #tpu.memory_space<vmem>>, %arg3: memref<16x1xf32, #tpu.memory_space<vmem>>, %arg4: memref<8x128xf32, #tpu.memory_space<vmem>>) attributes {dimension_semantics = [#tpu.dimension_semantics<arbitrary>], iteration_bounds = array<i64: 1>, scalar_prefetch = 0 : i64, scratch_operands = 0 : i64, tpu.core_type = #tpu.core_type<tc>, window_params = [{transform_indices = @transform_0, window_bounds = array<i64: 16, 8>}, {transform_indices = @transform_1, window_bounds = array<i64: 16, 1>}, {transform_indices = @transform_2, window_bounds = array<i64: 16, 1>}, {pipeline_mode = #tpu.pipeline_mode<synchronous>, transform_indices = @transform_3, window_bounds = array<i64: 8, 128>}]} {
    %c0_i32 = arith.constant 0 : i32
    %0 = arith.cmpi eq, %arg0, %c0_i32 : i32
    %1 = arith.extui %0 : i1 to i32
    %c0_i32_0 = arith.constant 0 : i32
    %2 = arith.cmpi ne, %1, %c0_i32_0 : i32
    scf.if %2 {
      %cst_17 = arith.constant 0.000000e+00 : f32
      %48 = vector.broadcast %cst_17 : f32 to vector<8x128xf32>
      %c0_18 = arith.constant 0 : index
      %c0_19 = arith.constant 0 : index
      %49 = vector.load %arg4[%c0_18, %c0_19] : memref<8x128xf32, #tpu.memory_space<vmem>>, vector<8x128xf32>
      tpu.vector_store %arg4[%c0_18, %c0_19], %48 {strides = array<i32>} : memref<8x128xf32, #tpu.memory_space<vmem>>, vector<8x128xf32>,
    } else {
    }
    %c0 = arith.constant 0 : index
    %c0_1 = arith.constant 0 : index
    %3 = vector.load %arg1[%c0, %c0_1] : memref<16x8xf32, #tpu.memory_space<vmem>>, vector<16x8xf32>
    %c0_2 = arith.constant 0 : index
    %c0_3 = arith.constant 0 : index
    %4 = vector.load %arg2[%c0_2, %c0_3] : memref<16x1xi32, #tpu.memory_space<vmem>>, vector<16x1xi32>
    %c0_4 = arith.constant 0 : index
    %c0_5 = arith.constant 0 : index
    %5 = vector.load %arg3[%c0_4, %c0_5] : memref<16x1xf32, #tpu.memory_space<vmem>>, vector<16x1xf32>
    %cst = arith.constant dense<0xFF800000> : vector<16xf32>
    %6 = vector.multi_reduction <maximumf>, %3, %cst [1] : vector<16x8xf32> to vector<16xf32>
    %7 = vector.shape_cast %6 : vector<16xf32> to vector<16x1xf32>
    %8 = vector.broadcast %7 : vector<16x1xf32> to vector<16x8xf32>
    %9 = arith.subf %3, %8 : vector<16x8xf32>
    %10 = math.exp %9 : vector<16x8xf32>
    %cst_6 = arith.constant dense<0.000000e+00> : vector<16xf32>
    %11 = vector.multi_reduction <add>, %10, %cst_6 [1] : vector<16x8xf32> to vector<16xf32>
    %12 = vector.shape_cast %11 : vector<16xf32> to vector<16x1xf32>
    %13 = math.log %12 : vector<16x1xf32>
    %14 = tpu.iota {dimensions = array<i32: 1>} : vector<16x8xi32>
    %15 = vector.broadcast %4 : vector<16x1xi32> to vector<16x8xi32>
    %16 = arith.cmpi eq, %14, %15 : vector<16x8xi32>
    %17 = arith.extui %16 : vector<16x8xi1> to vector<16x8xi32>
    %18 = arith.sitofp %17 : vector<16x8xi32> to vector<16x8xf32>
    %19 = arith.mulf %3, %18 : vector<16x8xf32>
    %cst_7 = arith.constant dense<0.000000e+00> : vector<16xf32>
    %20 = vector.multi_reduction <add>, %19, %cst_7 [1] : vector<16x8xf32> to vector<16xf32>
    %21 = vector.shape_cast %20 : vector<16xf32> to vector<16x1xf32>
    %22 = arith.subf %21, %7 : vector<16x1xf32>
    %23 = arith.subf %22, %13 : vector<16x1xf32>
    %24 = math.exp %23 : vector<16x1xf32>
    %cst_8 = arith.constant 1.000000e+00 : f32
    %25 = vector.broadcast %cst_8 : f32 to vector<16x1xf32>
    %26 = arith.subf %25, %24 : vector<16x1xf32>
    %27 = arith.mulf %26, %26 : vector<16x1xf32>
    %cst_9 = arith.constant 0.000000e+00 : f32
    %28 = vector.broadcast %cst_9 : f32 to vector<16x1xf32>
    %29 = arith.subf %28, %5 : vector<16x1xf32>
    %30 = arith.mulf %29, %27 : vector<16x1xf32>
    %31 = arith.mulf %30, %23 : vector<16x1xf32>
    %32 = tpu.iota {dimensions = array<i32: 0>} : vector<16x1xi32>
    %c16_i32 = arith.constant 16 : i32
    %33 = arith.muli %arg0, %c16_i32 : i32
    %34 = vector.broadcast %33 : i32 to vector<16x1xi32>
    %35 = arith.addi %34, %32 : vector<16x1xi32>
    %c16_i32_10 = arith.constant 16 : i32
    %36 = vector.broadcast %c16_i32_10 : i32 to vector<16x1xi32>
    %37 = arith.cmpi slt, %35, %36 : vector<16x1xi32>
    %cst_11 = arith.constant 0.000000e+00 : f32
    %38 = vector.broadcast %cst_11 : f32 to vector<16x1xf32>
    %39 = arith.select %37, %31, %38 : vector<16x1xi1>, vector<16x1xf32>
    %c0_12 = arith.constant 0 : index
    %c0_13 = arith.constant 0 : index
    %40 = vector.load %arg4[%c0_12, %c0_13] : memref<8x128xf32, #tpu.memory_space<vmem>>, vector<8x128xf32>
    %41 = vector.shape_cast %39 : vector<16x1xf32> to vector<1x16x1xf32>
    %cst_14 = arith.constant dense<0.000000e+00> : vector<1xf32>
    %42 = vector.multi_reduction <add>, %41, %cst_14 [1, 2] : vector<1x16x1xf32> to vector<1xf32>
    %43 = vector.shape_cast %42 : vector<1xf32> to vector<1x1x1xf32>
    %44 = vector.extract %43[0, 0, 0] : f32 from vector<1x1x1xf32>
    %45 = vector.broadcast %44 : f32 to vector<8x128xf32>
    %46 = arith.addf %40, %45 : vector<8x128xf32>
    %c0_15 = arith.constant 0 : index
    %c0_16 = arith.constant 0 : index
    %47 = vector.load %arg4[%c0_15, %c0_16] : memref<8x128xf32, #tpu.memory_space<vmem>>, vector<8x128xf32>
    tpu.vector_store %arg4[%c0_15, %c0_16], %46 {strides = array<i32>} : memref<8x128xf32, #tpu.memory_space<vmem>>, vector<8x128xf32>,
    return
  }
  func.func @transform_0(%arg0: i32) -> (i32, i32) {
    %c0_i32 = arith.constant 0 : i32
    %c0_i32_0 = arith.constant 0 : i32
    return %arg0, %c0_i32 : i32, i32
  }
  func.func @transform_1(%arg0: i32) -> (i32, i32) {
    %c0_i32 = arith.constant 0 : i32
    %c0_i32_0 = arith.constant 0 : i32
    return %arg0, %c0_i32 : i32, i32
  }
  func.func @transform_2(%arg0: i32) -> (i32, i32) {
    %c0_i32 = arith.constant 0 : i32
    %c0_i32_0 = arith.constant 0 : i32
    return %arg0, %c0_i32 : i32, i32
  }
  func.func @transform_3(%arg0: i32) -> (i32, i32) {
    %c0_i32 = arith.constant 0 : i32
    %c0_i32_0 = arith.constant 0 : i32
    %c0_i32_1 = arith.constant 0 : i32
    return %c0_i32, %c0_i32_0 : i32, i32
  }
}

</mosaic_0001>

<llo_original>
// kernel: tpu_custom_call.1
$region0: #{tpu_custom_call.1}
  #allocation0 [shape = 'u32[]', space=smem, size = 0x4, offset = 0x4, fixed_abs, tag = 'smem constant byte address 0x4 - core index']
  #allocation1 [shape = 'u32[72,128]{1,0:T(1,128)}', space=vmem, size = 0x9000, scoped, tag = 'internal scratch']
  %s0 = inlined_call_operand.vmem [shape: f32[16,8], index: 0, kind: input, shape index: {}]
  %s1 = inlined_call_operand.vmem [shape: s32[16,1], index: 1, kind: input, shape index: {}]
  %s2 = inlined_call_operand.vmem [shape: f32[16,1], index: 2, kind: input, shape index: {}]
  %s3 = inlined_call_operand.hbm [shape: f32[8,128], index: 3, kind: output, shape index: {}]
  %s4 = sld [smem:[#allocation0]]
  $region26: #{tpu_custom_call.1} parent=0
    _
  %s6 = ssub.s32 1, %s4
  %s7 = scalar_select 0, %s6, %s4
  $region1: #{tpu_custom_call.1} parent=0
    #allocation2 [shape = 'u8[4096]{0}', space=vmem, size = 0x1000, scoped, tag = 'output window, operand 0, single buffered']
    #allocation3 [shape = 's32[1]{0}', space=sflag, size = 0x4, scoped, tag = 'scoped memory for tpu_custom_call.1']
    %8 = vsyncpa [#allocation3], 0
    // Predicated region
    $region2: #{tpu_custom_call.1} parent=1 // pred_check
      _
    $region3: #{tpu_custom_call.1} parent=1 // pred_check_branch
      %10 = sbr.rel (0) target = $region5
    $region4: #{tpu_custom_call.1} parent=1 // pred_region
      _
    $region5: #{tpu_custom_call.1} parent=1 // pred_fallthru
      _
    // Predicated region
    $region6: #{tpu_custom_call.1} parent=1 // pred_check
      _
    $region7: #{tpu_custom_call.1} parent=1 // pred_check_branch
      %12 = sbr.rel (0) target = $region9
    $region8: #{tpu_custom_call.1} parent=1 // pred_region
      _
    $region9: #{tpu_custom_call.1} parent=1 // pred_fallthru
      _
    // Predicated region
    $region10: #{tpu_custom_call.1} parent=1 // pred_check
      _
    $region11: #{tpu_custom_call.1} parent=1 // pred_check_branch
      %14 = sbr.rel (0) target = $region13
    $region12: #{tpu_custom_call.1} parent=1 // pred_region
      _
    $region13: #{tpu_custom_call.1} parent=1 // pred_fallthru
      _
    %p15 = scmp.eq.s32.totalorder 0, 0
    // Predicated region
    $region14: #{tpu_custom_call.1} parent=1 // pred_check
      %p16 = pneg %p15
    $region15: #{tpu_custom_call.1} parent=1 // pred_check_branch
      %18 = sbr.rel (%p16) target = $region17
    $region16: #{tpu_custom_call.1} parent=1 // pred_region
      %19 = vst [vmem:[#allocation2] sm:$0xff] 0.0
    $region17: #{tpu_custom_call.1} parent=1 // pred_fallthru
      _
    %v20 = vld [vmem:[%s0] sm:$0xff]
    %v21 = vld [vmem:[%s0 + $0x8] sm:$0xff]
    %v22 = vld [vmem:[%s1] sm:$0xff]
    %v23 = vld [vmem:[%s1 + $0x8] sm:$0xff]
    %v24 = vld [vmem:[%s2] sm:$0xff]
    %v25 = vld [vmem:[%s2 + $0x8] sm:$0xff]
    %vm26 = vcmask 64512
    %v27 = vsel %vm26, %v20, -inf
    %28 = vmax.xlane.f32.xlu0 %v27
    %v29 = vpop.xlane.xlu0 %28
    %v30 = vsel %vm26, %v21, -inf
    %31 = vmax.xlane.f32.xlu0 %v30
    %v32 = vpop.xlane.xlu0 %31
    %v33 = vsub.f32 %v20, %v29
    %v34 = vsub.f32 %v21, %v32
    %v35 = vmul.f32 %v33, 1.442695
    %v36 = vpow.pop %v35
    %v37 = vmul.f32 %v34, 1.442695
    %v38 = vpow.pop %v37
    %v39 = vsel %vm26, %v36, 0.0
    %40 = vadd.xlane.f32.xlu0 %v39
    %v41 = vpop.xlane.xlu0 %40
    %v42 = vsel %vm26, %v38, 0.0
    %43 = vadd.xlane.f32.xlu0 %v42
    %v44 = vpop.xlane.xlu0 %43
    %v45 = vlog2.pop %v41
    %v46 = vmul.f32 %v45, 0.6931472
    %v47 = vlog2.pop %v44
    %v48 = vmul.f32 %v47, 0.6931472
    %v49 = vlaneseq
    %v50 = vand.u32 %v49, 127
    %51 = vset.pattern.permute.xlu0 0
    %52 = vperm.xlu0 %51, %v22
    %v53 = vpop.permute.xlu0 %52
    %54 = vset.pattern.permute.xlu0 0
    %55 = vperm.xlu0 %54, %v23
    %v56 = vpop.permute.xlu0 %55
    %vm57 = vcmp.eq.s32.totalorder %v50, %v53
    %vm58 = vcmp.eq.s32.totalorder %v50, %v56
    %v59 = vsel %vm57, 1, 0
    %v60 = vsel %vm58, 1, 0
    %v61 = vcvt.s32.f32 %v59
    %v62 = vcvt.s32.f32 %v60
    %v63 = vmul.f32 %v20, %v61
    %v64 = vmul.f32 %v21, %v62
    %v65 = vsel %vm26, %v63, 0.0
    %66 = vadd.xlane.f32.xlu0 %v65
    %v67 = vpop.xlane.xlu0 %66
    %v68 = vsel %vm26, %v64, 0.0
    %69 = vadd.xlane.f32.xlu0 %v68
    %v70 = vpop.xlane.xlu0 %69
    %v71 = vsub.f32 %v67, %v29
    %v72 = vsub.f32 %v70, %v32
    %v73 = vsub.f32 %v71, %v46
    %v74 = vsub.f32 %v72, %v48
    %v75 = vmul.f32 %v73, 1.442695
    %v76 = vpow.pop %v75
    %v77 = vmul.f32 %v74, 1.442695
    %v78 = vpow.pop %v77
    %v79 = vsub.f32 1.0, %v76
    %v80 = vsub.f32 1.0, %v78
    %v81 = vmul.f32 %v79, %v79
    %v82 = vmul.f32 %v80, %v80
    %v83 = vsub.f32 0.0, %v24
    %v84 = vsub.f32 0.0, %v25
    %v85 = vmul.f32 %v83, %v81
    %v86 = vmul.f32 %v84, %v82
    %v87 = vmul.f32 %v85, %v73
    %v88 = vmul.f32 %v86, %v74
    %v89 = vlaneseq
    %v90 = vshrl.u32 %v89, 7
    %v91 = vadd.s32 %v90, 8
    %s92 = smul.u32 0, 16
    %v93 = vstv %s92
    %v94 = vadd.s32 %v93, %v90
    %v95 = vadd.s32 %v93, %v91
    %vm96 = vcmp.lt.s32.totalorder %v94, 16
    %vm97 = vcmp.lt.s32.totalorder %v95, 16
    %v98 = vsel %vm96, %v87, 0.0
    %v99 = vsel %vm97, %v88, 0.0
    %v100 = vld [vmem:[#allocation2] sm:$0xff]
    %vm101 = vcmask 7168
    %v102 = vsel %vm101, %v98, 0.0
    %v103 = vsel %vm101, %v99, 0.0
    %v104 = vadd.f32 %v102, %v103
    %105 = vadd.xlane.f32.xlu0 %v104
    %v106 = vpop.xlane.xlu0 %105
    %v107 = vrot.slane %v106, 4
    %v108 = vadd.f32 %v106, %v107
    %v109 = vrot.slane %v108, 2
    %v110 = vadd.f32 %v108, %v109
    %v111 = vrot.slane %v110, 1
    %v112 = vadd.f32 %v110, %v111
    %s113 = vtos %v112
    %v114 = vstv %s113
    %v115 = vadd.f32 %v100, %v114
    %116 = vst [vmem:[#allocation2] sm:$0xff] %v115
    // Predicated region
    $region18: #{tpu_custom_call.1} parent=1 // pred_check
      _
    $region19: #{tpu_custom_call.1} parent=1 // pred_check_branch
      %118 = sbr.rel (0) target = $region21
    $region20: #{tpu_custom_call.1} parent=1 // pred_region
      %120 = vsyncadd [#allocation3], 0
      %s122 = sshll.u32 [#allocation2], 4
      %s123 = int_to_ptr.vmem [resolvable:$true] %s122
      %s124 = sshll.u32 %s3, 4
      %s125 = int_to_ptr.hbm [resolvable:$true] %s124
      %127 = dma.vmem_to_hbm [thread:$0]  %s123, 128, %s125, [#allocation3]
    $region21: #{tpu_custom_call.1} parent=1 // pred_fallthru
      _
    // Predicated region
    $region22: #{tpu_custom_call.1} parent=1 // pred_check
      _
    $region23: #{tpu_custom_call.1} parent=1 // pred_check_branch
      %129 = sbr.rel (0) target = $region25
    $region24: #{tpu_custom_call.1} parent=1 // pred_region
      %131 = dma.done [#allocation3], 128
    $region25: #{tpu_custom_call.1} parent=1 // pred_fallthru
      _
    %132 = vsyncpa [#allocation3], 1

</llo_original>
